<compile_context>
chip_gen: v7x
topology: tpu7x:2x2x1
jax: 0.10.0
libtpu: 0.0.40
codegen_flags: <defaults>
</compile_context>

<pallas_src>
import functools
import math

import jax
import jax.numpy as jnp
from jax.experimental import pallas as pl
from jax.experimental.pallas import tpu as pltpu


# -------------------------- tuning knobs ---------------------------------
_MIN_PALLAS_ELEMS = 2048          # below this, fused XLA elementwise wins


def _round_up(x: int, m: int) -> int:
    return ((x + m - 1) // m) * m


def _device_kind() -> str:
    try:
        return jax.devices()[0].device_kind.lower()
    except Exception:  # pragma: no cover - no device visible at trace time
        return ""


def _is_pre_v6() -> bool:
    kind = _device_kind()
    return any(tag in kind for tag in ("v2", "v3", "v4", "v5"))


def _target_tile_bytes() -> int:
    # v5e HBM ~0.82 TB/s: a 2 MiB tile is already ~5 us, so the 0.35 us step
    # overhead is <10%; bigger tiles only risk the 16 MiB scoped default.
    # v6e/v7x (1.4 / 3.2 TB/s): 4 MiB/buffer halves step overhead.
    return (2 << 20) if _is_pre_v6() else (4 << 20)


def _needs_f32_upcast(dtype) -> bool:
    # Only pre-v6 chips lack bf16 VPU/EUP; elsewhere compute tanh natively.
    if jnp.dtype(dtype).itemsize >= 4:
        return False
    return _is_pre_v6()


def _pick_tile_rows(rows: int, itemsize: int, target_bytes: int) -> int:
    target_rows = max(8, (target_bytes // (128 * itemsize)) // 8 * 8)
    # Keep at least 2 grid steps so the "parallel" axis can actually shard
    # across v7x's two TensorCores and the DMA pipeline overlaps.
    half_rows = max(8, _round_up(-(-rows // 2), 8))
    return min(target_rows, half_rows)


# -------------------------- kernel -----------------------------------------
def _lar2par_lane_dense_kernel(g_ref, out_ref, *, d: int, tile_rows: int,
                               upcast: bool):
    """Block is (tile_rows, 128) of the row-major-flattened array."""
    g = g_ref[...]
    x = g.astype(jnp.float32) if upcast else g
    k = jnp.tanh(0.5 * x).astype(g.dtype)

    lane = jax.lax.broadcasted_iota(jnp.int32, g.shape, 1)
    if 128 % d == 0:
        # d divides 128 (hence d is a power of two): the gain position only
        # depends on the lane -> single AND + compare per element.
        is_gain = (lane & (d - 1)) == 0
    else:
        row = jax.lax.broadcasted_iota(jnp.int32, g.shape, 0)
        # Phase of this tile's first element within its (M+1)-vector, with all
        # factors reduced mod d first (no int32 flat index -> overflow-safe).
        # Safe for d up to ~46k (product of two residues stays < 2**31).
        base_row_mod = ((pl.program_id(0) % d) * (tile_rows % d)) % d
        base_phase = (base_row_mod * (128 % d)) % d
        phase = (row * (128 % d) + lane + base_phase) % d
        is_gain = phase == 0

    out_ref[...] = jnp.where(is_gain, g, k)   # gain passed through bit-exactly


def _run_lane_dense(g2: jax.Array, d: int, upcast: bool) -> jax.Array:
    """Run the lane-dense kernel on a (rows, 128) array (rows >= 16)."""
    rows = g2.shape[0]
    itemsize = jnp.dtype(g2.dtype).itemsize
    tile_rows = _pick_tile_rows(rows, itemsize, _target_tile_bytes())
    grid = (pl.cdiv(rows, tile_rows),)

    total = rows * 128
    tile_bytes = tile_rows * 128 * itemsize
    # 2 buffers each for input and output, plus slack; keep within every
    # generation's physical VMEM (v7x: 64 MiB) and scoped defaults.
    vmem_limit = min(32 << 20, max(16 << 20, 4 * tile_bytes + (2 << 20)))

    cost = pl.CostEstimate(
        flops=2 * total,
        transcendentals=(total // d) * (d - 1),
        bytes_accessed=2 * total * itemsize,
    )
    cparams = pltpu.CompilerParams(
        dimension_semantics=("parallel",),
        vmem_limit_bytes=vmem_limit,
    )
    kernel = functools.partial(
        _lar2par_lane_dense_kernel, d=d, tile_rows=tile_rows, upcast=upcast
    )
    return pl.pallas_call(
        kernel,
        out_shape=jax.ShapeDtypeStruct((rows, 128), g2.dtype),
        grid=grid,
        in_specs=[pl.BlockSpec((tile_rows, 128), lambda i: (i, 0))],
        out_specs=pl.BlockSpec((tile_rows, 128), lambda i: (i, 0)),
        compiler_params=cparams,
        cost_estimate=cost,
    )(g2)


# -------------------------- wrapper ----------------------------------------
def _lar2par_ref(g: jax.Array) -> jax.Array:
    """Pure-JAX reference mirroring the PyTorch _forward."""
    K = g[..., :1]
    rest = g[..., 1:]
    return jnp.concatenate([K, jnp.tanh(0.5 * rest)], axis=-1)


def lar2par(g: jax.Array, par_order: int) -> jax.Array:
    """Convert log area ratios to PARCOR coefficients (Pallas TPU kernel)."""
    assert par_order >= 0
    assert g.shape[-1] == par_order + 1, "dimension of parcor mismatch"

    d = par_order + 1
    orig_shape = g.shape
    total = math.prod(orig_shape)

    if total == 0 or d == 1:
        return g                                    # M=0: output == input
    if total < _MIN_PALLAS_ELEMS:
        return _lar2par_ref(g)                      # launch overhead dominates

    upcast = _needs_f32_upcast(g.dtype)
    rows = total // 128
    main = rows * 128

    if main == total:
        # Lane-dense fast path, no slicing needed.
        out = _run_lane_dense(g.reshape(rows, 128), d, upcast)
        return out.reshape(orig_shape)

    # Odd total: >99% of the bytes still go through the unmasked lane-dense
    # kernel; only the <128-element tail is handled in pure JAX.
    g_flat = g.reshape(-1)
    head_out = _run_lane_dense(g_flat[:main].reshape(rows, 128), d, upcast)

    tail = g_flat[main:]
    # Position within each (M+1)-vector, with the base reduced mod d in Python
    # (arbitrary precision) so no on-device index can overflow.
    pos = (jnp.arange(total - main, dtype=jnp.int32) + (main % d)) % d
    tail_k = jnp.tanh(0.5 * tail.astype(jnp.float32)).astype(g.dtype)
    tail_out = jnp.where(pos == 0, tail, tail_k)

    out_flat = jnp.concatenate([head_out.reshape(-1), tail_out])
    return out_flat.reshape(orig_shape)


# -------------------------- self-test ---------------------------------------
if __name__ == "__main__":
    par_order = 15
    d = par_order + 1

    # Main case: (2, 4, 16, 16) = 2048 elems -> lane-dense path, 2 grid steps,
    # d | 128 so the gain mask is the single-iota fast form.
    g_big = jax.random.normal(
        jax.random.PRNGKey(0), (2, 4, 16, d), dtype=jnp.float32
    ) * 0.5
    k_big = jax.block_until_ready(lar2par(g_big, par_order))
    assert k_big.shape == g_big.shape
    assert jnp.allclose(k_big, _lar2par_ref(g_big), atol=1e-6, rtol=1e-6)
    # Gain column must be bit-exact.
    assert jnp.array_equal(k_big[..., 0], g_big[..., 0])

    # Odd size (total not divisible by 128, d=17 not a divisor of 128):
    # lane-dense head + pure-JAX tail path, general phase-reduced mask.
    g_odd = jax.random.normal(
        jax.random.PRNGKey(1), (8, 33, 17), dtype=jnp.float32
    ) * 0.5
    k_odd = jax.block_until_ready(lar2par(g_odd, 16))
    assert k_odd.shape == g_odd.shape
    assert jnp.allclose(k_odd, _lar2par_ref(g_odd), atol=1e-6, rtol=1e-6)
    assert jnp.array_equal(k_odd[..., 0], g_odd[..., 0])

    # bf16 input: native bf16 compute on v6e/v7x (f32 upcast only pre-v6).
    g_bf16 = (jax.random.normal(
        jax.random.PRNGKey(2), (4, 8, 32, d), dtype=jnp.float32
    ) * 0.5).astype(jnp.bfloat16)
    k_bf16 = jax.block_until_ready(lar2par(g_bf16, par_order))
    ref_bf16 = _lar2par_ref(g_bf16.astype(jnp.float32)).astype(jnp.bfloat16)
    assert jnp.allclose(k_bf16.astype(jnp.float32),
                        ref_bf16.astype(jnp.float32), atol=2e-2, rtol=2e-2)
    assert jnp.array_equal(k_bf16[..., 0], g_bf16[..., 0])

    # Tiny input: (2, 4, 16) -> pure-JAX short-circuit.
    g_tiny = jax.random.normal(
        jax.random.PRNGKey(3), (2, 4, d), dtype=jnp.float32
    ) * 0.5
    k_tiny = jax.block_until_ready(lar2par(g_tiny, par_order))
    assert jnp.allclose(k_tiny, _lar2par_ref(g_tiny), atol=1e-6, rtol=1e-6)

    print("KERNEL_OK")
</pallas_src>

<mosaic_0001>
module attributes {stable_mosaic.version = 11 : i64} {
  func.func @_lar2par_lane_dense_kernel(%arg0: i32, %arg1: memref<8x128xf32, #tpu.memory_space<vmem>>, %arg2: memref<8x128xf32, #tpu.memory_space<vmem>>) attributes {dimension_semantics = [#tpu.dimension_semantics<parallel>], iteration_bounds = array<i64: 2>, scalar_prefetch = 0 : i64, scratch_operands = 0 : i64, tpu.core_type = #tpu.core_type<tc>, window_params = [{transform_indices = @transform_0, window_bounds = array<i64: 8, 128>}, {transform_indices = @transform_1, window_bounds = array<i64: 8, 128>}]} {
    %c0 = arith.constant 0 : index
    %c0_0 = arith.constant 0 : index
    %0 = vector.load %arg1[%c0, %c0_0] : memref<8x128xf32, #tpu.memory_space<vmem>>, vector<8x128xf32>
    %cst = arith.constant 5.000000e-01 : f32
    %1 = vector.broadcast %cst : f32 to vector<8x128xf32>
    %2 = arith.mulf %1, %0 : vector<8x128xf32>
    %3 = math.tanh %2 : vector<8x128xf32>
    %4 = tpu.iota {dimensions = array<i32: 1>} : vector<8x128xi32>
    %c15_i32 = arith.constant 15 : i32
    %5 = vector.broadcast %c15_i32 : i32 to vector<8x128xi32>
    %6 = arith.andi %4, %5 : vector<8x128xi32>
    %c0_i32 = arith.constant 0 : i32
    %7 = vector.broadcast %c0_i32 : i32 to vector<8x128xi32>
    %8 = arith.cmpi eq, %6, %7 : vector<8x128xi32>
    %9 = arith.select %8, %0, %3 : vector<8x128xi1>, vector<8x128xf32>
    %c0_1 = arith.constant 0 : index
    %c0_2 = arith.constant 0 : index
    %10 = vector.load %arg2[%c0_1, %c0_2] : memref<8x128xf32, #tpu.memory_space<vmem>>, vector<8x128xf32>
    tpu.vector_store %arg2[%c0_1, %c0_2], %9 {strides = array<i32>} : memref<8x128xf32, #tpu.memory_space<vmem>>, vector<8x128xf32>,
    return
  }
  func.func @transform_0(%arg0: i32) -> (i32, i32) {
    %c0_i32 = arith.constant 0 : i32
    %c0_i32_0 = arith.constant 0 : i32
    return %arg0, %c0_i32 : i32, i32
  }
  func.func @transform_1(%arg0: i32) -> (i32, i32) {
    %c0_i32 = arith.constant 0 : i32
    %c0_i32_0 = arith.constant 0 : i32
    return %arg0, %c0_i32 : i32, i32
  }
}

</mosaic_0001>

<llo_original>
// kernel: tpu_custom_call.1
$region0: #{tpu_custom_call.1}
  #allocation0 [shape = 'u32[]', space=smem, size = 0x4, offset = 0x4, fixed_abs, tag = 'smem constant byte address 0x4 - core index']
  #allocation1 [shape = 'u32[144,128]{1,0:T(1,128)}', space=vmem, size = 0x12000, scoped, tag = 'internal scratch']
  %s0 = inlined_call_operand.hbm [shape: f32[16,128], index: 0, kind: input, shape index: {}]
  %s1 = inlined_call_operand.hbm [shape: f32[16,128], index: 1, kind: output, shape index: {}]
  %s2 = sld [smem:[#allocation0]]
  $region41: #{tpu_custom_call.1} parent=0
    _
  %s4 = ssub.s32 1, %s2
  %s5 = scalar_select 0, %s4, %s2
  $region1: #{tpu_custom_call.1} parent=0
    #allocation2 [shape = 'u8[8192]{0}', space=vmem, size = 0x2000, scoped, tag = 'input window, operand 0']
    #allocation3 [shape = 's32[2]{0}', space=sflag, size = 0x8, scoped, tag = 'scoped memory for tpu_custom_call.1']
    #allocation4 [shape = 's32[2]{0}', space=sflag, size = 0x8, scoped, tag = 'scoped memory for tpu_custom_call.1']
    #allocation5 [shape = 'u8[8192]{0}', space=vmem, size = 0x2000, scoped, tag = 'output window, operand 0']
    %6 = vsyncpa [#allocation3], 0
    %s7 = scalar_lea.sflag [#allocation3], 1
    %8 = vsyncpa %s7, 0
    %9 = vsyncpa [#allocation4], 0
    %s10 = scalar_lea.sflag [#allocation4], 1
    %11 = vsyncpa %s10, 0
    loop: start=0, step=1, limit=4
    $region2: #{tpu_custom_call.1} parent=1 // loop_pre_header
      _
    $region3: #{tpu_custom_call.1} parent=1 // loop_header
      %s13 = sphi 0, %s17
      %p14 = scmp.ge.s32.totalorder %s13, 4
      %s23 = sphi 0, %s25
      %s26 = sphi 0, %s23
      %s27 = sphi 0, %s26
      %s43 = sphi 0, %s27
      %s49 = sphi 0, %s51
      %s52 = sphi 0, %s49
      %s53 = sphi 0, %s52
      %s69 = sphi 0, %s53
    $region4: #{tpu_custom_call.1} parent=1 // loop_header_branch
      %16 = sbr.rel (%p14) target = $region8
    $region5: #{tpu_custom_call.1} parent=1 // loop_body
      %s18 = ssub.s32 %s13, 1
      %s19 = ssub.s32 %s13, 2
      %s20 = sadd.s32 %s13, 1
      %s21 = ssub.s32 %s13, %s20
      %p22 = scmp.eq.s32.totalorder %s21, 0
      %s24 = sadd.s32 %s23, 1
      %s25 = scalar_select %p22, %s23, %s24
      %p28 = pneg %p22
      %p29 = scmp.eq.s32.totalorder %s13, 1
      %p30 = por %p28, %p29
      %p31 = scmp.ne.s32.totalorder %s23, %s26
      %p32 = scmp.eq.s32.totalorder %s13, 0
      %p33 = por %p31, %p32
      %p34 = scmp.ne.s32.totalorder %s23, %s26
      %p35 = scmp.eq.s32.totalorder %s18, 1
      %p36 = por %p34, %p35
      %p37 = scmp.ne.s32.totalorder %s26, %s27
      %p38 = scmp.eq.s32.totalorder %s18, 0
      %p39 = por %p37, %p38
      %p40 = scmp.ne.s32.totalorder %s26, %s27
      %p41 = scmp.eq.s32.totalorder %s19, 1
      %p42 = por %p40, %p41
      %p44 = scmp.ne.s32.totalorder %s27, %s43
      %p45 = scmp.eq.s32.totalorder %s19, 0
      %p46 = por %p44, %p45
      %s47 = ssub.s32 %s13, %s20
      %p48 = scmp.eq.s32.totalorder %s47, 0
      %s50 = sadd.s32 %s49, 1
      %s51 = scalar_select %p48, %s49, %s50
      %p54 = pneg %p48
      %p55 = scmp.eq.s32.totalorder %s13, 1
      %p56 = por %p54, %p55
      %p57 = scmp.ne.s32.totalorder %s49, %s52
      %p58 = scmp.eq.s32.totalorder %s13, 0
      %p59 = por %p57, %p58
      %p60 = scmp.ne.s32.totalorder %s49, %s52
      %p61 = scmp.eq.s32.totalorder %s18, 1
      %p62 = por %p60, %p61
      %p63 = scmp.ne.s32.totalorder %s52, %s53
      %p64 = scmp.eq.s32.totalorder %s18, 0
      %p65 = por %p63, %p64
      %p66 = scmp.ne.s32.totalorder %s52, %s53
      %p67 = scmp.eq.s32.totalorder %s19, 1
      %p68 = por %p66, %p67
      %p70 = scmp.ne.s32.totalorder %s53, %s69
      %p71 = scmp.eq.s32.totalorder %s19, 0
      %p72 = por %p70, %p71
      %p73 = scmp.le.s32.totalorder 1, %s13
      %p74 = scmp.lt.s32.totalorder %s13, 3
      %p75 = pnand %p73, %p74
      %p76 = pneg %p75
      // Predicated region
      $region9: #{tpu_custom_call.1} parent=5 // pred_check
        _
      $region10: #{tpu_custom_call.1} parent=5 // pred_check_branch
        %78 = sbr.rel (%p75) target = $region12
      $region11: #{tpu_custom_call.1} parent=5 // pred_region
        %s79 = ssub.s32 %s13, 1
      $region12: #{tpu_custom_call.1} parent=5 // pred_fallthru
        _
      %p80 = scmp.lt.s32.totalorder %s13, 2
      // Predicated region
      $region13: #{tpu_custom_call.1} parent=5 // pred_check
        %p81 = pneg %p80
      $region14: #{tpu_custom_call.1} parent=5 // pred_check_branch
        %83 = sbr.rel (%p81) target = $region16
      $region15: #{tpu_custom_call.1} parent=5 // pred_region
        // Predicated region
        $region17: #{tpu_custom_call.1} parent=15 // pred_check
          %p84 = pneg %p33
        $region18: #{tpu_custom_call.1} parent=15 // pred_check_branch
          %86 = sbr.rel (%p84) target = $region20
        $region19: #{tpu_custom_call.1} parent=15 // pred_region
          %s87 = sand.u32 %s23, 1
          %s88 = scalar_lea.sflag [#allocation3], %s87
          %s89 = sand.u32 %s23, 1
          %s90 = smul.addr %s89, 8
          %s91 = scalar_lea.vmem [#allocation2], %s90
          %s93 = ssub.s32 128, 128
          %94 = vsyncadd %s88, %s93
          %s95 = smul.addr %s13, 128
          %s96 = scalar_lea.hbm %s0, %s95
          %s98 = sshll.u32 %s91, 4
          %s99 = int_to_ptr.vmem [resolvable:$true] %s98
          %101 = dma.hbm_to_vmem [thread:$0]  %s96, 128, %s99, %s88
        $region20: #{tpu_custom_call.1} parent=15 // pred_fallthru
          _
      $region16: #{tpu_custom_call.1} parent=5 // pred_fallthru
        _
      %p102 = scmp.le.s32.totalorder 1, %s13
      %p103 = scmp.lt.s32.totalorder %s13, 3
      %p104 = pnand %p102, %p103
      %p105 = pneg %p104
      // Predicated region
      $region21: #{tpu_custom_call.1} parent=5 // pred_check
        _
      $region22: #{tpu_custom_call.1} parent=5 // pred_check_branch
        %107 = sbr.rel (%p104) target = $region24
      $region23: #{tpu_custom_call.1} parent=5 // pred_region
        %s108 = ssub.s32 %s13, 1
        %s109 = sand.u32 %s26, 1
        %s110 = scalar_lea.sflag [#allocation3], %s109
        %s111 = sand.u32 %s26, 1
        %s112 = smul.addr %s111, 8
        %s113 = scalar_lea.vmem [#allocation2], %s112
        // Predicated region
        $region25: #{tpu_custom_call.1} parent=23 // pred_check
          %p114 = pneg %p39
        $region26: #{tpu_custom_call.1} parent=23 // pred_check_branch
          %116 = sbr.rel (%p114) target = $region28
        $region27: #{tpu_custom_call.1} parent=23 // pred_region
          %117 = dma.done %s110, 128
        $region28: #{tpu_custom_call.1} parent=23 // pred_fallthru
          _
        %s118 = sand.u32 %s26, 1
        %s119 = scalar_lea.sflag [#allocation3], %s118
        %s120 = sand.u32 %s26, 1
        %s121 = smul.addr %s120, 8
        %s122 = scalar_lea.vmem [#allocation2], %s121
        %p123 = pneg %p39
        %p124 = pneg %p36
        %p125 = pneg %p65
        %p126 = pneg %p62
        %s127 = sand.u32 %s52, 1
        %s128 = scalar_lea.sflag [#allocation4], %s127
        %s129 = sand.u32 %s52, 1
        %s130 = smul.addr %s129, 8
        %s131 = scalar_lea.vmem [#allocation5], %s130
        %v132 = vld [vmem:[%s113] sm:$0xff]
        %v133 = vmul.f32 %v132, 0.5
        %v134 = vtanh.pop %v133
        %v135 = vlaneseq
        %v136 = vand.u32 %v135, 127
        %v137 = vand.u32 %v136, 15
        %vm138 = vcmp.eq.s32.totalorder %v137, 0
        %v139 = vsel %vm138, %v132, %v134
        %140 = vst [vmem:[%s131] sm:$0xff] %v139
        %s141 = sand.u32 %s52, 1
        %s142 = scalar_lea.sflag [#allocation4], %s141
        %s143 = sand.u32 %s52, 1
        %s144 = smul.addr %s143, 8
        %s145 = scalar_lea.vmem [#allocation5], %s144
        // Predicated region
        $region29: #{tpu_custom_call.1} parent=23 // pred_check
          %p146 = pneg %p62
        $region30: #{tpu_custom_call.1} parent=23 // pred_check_branch
          %148 = sbr.rel (%p146) target = $region32
        $region31: #{tpu_custom_call.1} parent=23 // pred_region
          %s150 = ssub.s32 128, 128
          %151 = vsyncadd %s142, %s150
          %s152 = smul.addr %s18, 128
          %s153 = scalar_lea.hbm %s1, %s152
          %s155 = sshll.u32 %s145, 4
          %s156 = int_to_ptr.vmem [resolvable:$true] %s155
          %158 = dma.vmem_to_hbm [thread:$0]  %s156, 128, %s153, %s142
        $region32: #{tpu_custom_call.1} parent=23 // pred_fallthru
          _
      $region24: #{tpu_custom_call.1} parent=5 // pred_fallthru
        _
      %p159 = scmp.le.s32.totalorder 2, %s13
      // Predicated region
      $region33: #{tpu_custom_call.1} parent=5 // pred_check
        %p160 = pneg %p159
      $region34: #{tpu_custom_call.1} parent=5 // pred_check_branch
        %162 = sbr.rel (%p160) target = $region36
      $region35: #{tpu_custom_call.1} parent=5 // pred_region
        %s163 = ssub.s32 %s13, 2
        // Predicated region
        $region37: #{tpu_custom_call.1} parent=35 // pred_check
          %p164 = pneg %p68
        $region38: #{tpu_custom_call.1} parent=35 // pred_check_branch
          %166 = sbr.rel (%p164) target = $region40
        $region39: #{tpu_custom_call.1} parent=35 // pred_region
          %s167 = sand.u32 %s53, 1
          %s168 = scalar_lea.sflag [#allocation4], %s167
          %s169 = sand.u32 %s53, 1
          %s170 = smul.addr %s169, 8
          %s171 = scalar_lea.vmem [#allocation5], %s170
          %172 = dma.done %s168, 128
        $region40: #{tpu_custom_call.1} parent=35 // pred_fallthru
          _
      $region36: #{tpu_custom_call.1} parent=5 // pred_fallthru
        _
    $region6: #{tpu_custom_call.1} parent=1 // loop_footer
      %s17 = sadd.s32 1, %s13
    $region7: #{tpu_custom_call.1} parent=1 // loop_footer_branch
      %12 = sbr.rel target = $region3
    $region8: #{tpu_custom_call.1} parent=1 // loop_exit
      _
    %173 = vsyncpa [#allocation3], 1
    %s174 = scalar_lea.sflag [#allocation3], 1
    %175 = vsyncpa %s174, 1
    %176 = vsyncpa [#allocation4], 1
    %s177 = scalar_lea.sflag [#allocation4], 1
    %178 = vsyncpa %s177, 1

</llo_original>
